<compile_context>
chip_gen: v7x
topology: tpu7x:2x2x1
jax: 0.10.0
libtpu: 0.0.40
codegen_flags: <defaults>
</compile_context>

<pallas_src>
import math

import jax
import jax.numpy as jnp
from jax.experimental import pallas as pl
from jax.experimental.pallas import tpu as pltpu


def _round_up(x, m):
    return ((x + m - 1) // m) * m


# ----------------------------------------------------------------------------
# Kernel
# ----------------------------------------------------------------------------
def _graph_node_feature_kernel(x_ref, idx_ref, w_ref, tbl_ref, bias_ref,
                               tok_ref, o_ref):
    # x_ref:    (G, N, K*F) f32  atom features for G whole graphs
    # idx_ref:  (G, N, 1)   i32  in-degree indices
    # w_ref:    (K*F, Hp)   bf16 node_encoder W.T tiled K times   (resident)
    # tbl_ref:  (D, Hp)     bf16 in-degree embedding table        (resident)
    # bias_ref: (1, Hp)     f32  K * linear bias                  (resident)
    # tok_ref:  (1, Hp)     f32  graph token embedding            (resident)
    # o_ref:    (G, N+1, Hp) out dtype; row 0 = token, rows 1..N = nodes
    g, n, kf = x_ref.shape
    h = o_ref.shape[-1]
    d = tbl_ref.shape[0]
    gn = g * n

    # In-kernel bf16 cast (VPU, hidden under DMA/MXU); the sum over the K
    # atoms is part of the contraction because W.T is tiled K times.
    xb = x_ref[...].astype(jnp.bfloat16).reshape(gn, kf)
    acc = jnp.dot(xb, w_ref[...], preferred_element_type=jnp.float32)  # (gn, h)

    # In-degree embedding lookup as a bf16 one-hot MXU matmul (exact one-hot).
    ids = idx_ref[...].reshape(gn, 1)                                  # (gn, 1)
    iota = jax.lax.broadcasted_iota(jnp.int32, (gn, d), 1)
    onehot = (iota == ids).astype(jnp.bfloat16)                        # (gn, d)
    acc = acc + jnp.dot(onehot, tbl_ref[...],
                        preferred_element_type=jnp.float32)

    # f32 epilogue: K * bias (kept out of the bf16 table for precision).
    acc = acc + bias_ref[...]

    # Fused "concat": node rows at offset 1, graph token in row 0.
    o_ref[:, pl.ds(1, n), :] = acc.reshape(g, n, h).astype(o_ref.dtype)
    tok = jnp.broadcast_to(tok_ref[...].reshape(1, 1, h), (g, 1, h))
    o_ref[:, pl.ds(0, 1), :] = tok.astype(o_ref.dtype)


# ----------------------------------------------------------------------------
# VMEM budgeting / tile selection
# ----------------------------------------------------------------------------
def _resident_vmem_bytes(kf, d, h):
    lane, sub = 128, 8
    hp = _round_up(h, lane)
    return 2 * (_round_up(kf, sub) * hp * 2      # W (bf16)
                + _round_up(d, sub) * hp * 2     # table (bf16)
                + 2 * sub * hp * 4)              # bias + token (f32)


def _tile_vmem_bytes(g, n, kf, d, h, out_itemsize):
    """Rough per-step VMEM for the block-dependent part (padded to (8,128)
    tiles; Pallas blocks double-buffered, in-kernel temporaries single)."""
    lane, sub = 128, 8
    n_p, np1_p = _round_up(n, sub), _round_up(n + 1, sub)
    kf_p, d_p, h_p = _round_up(kf, lane), _round_up(d, lane), _round_up(h, lane)
    gn = g * n_p
    blocks = 2 * g * n_p * kf_p * 4                      # x tile (f32)
    blocks += 2 * g * n_p * lane * 4                     # idx tile (i32)
    blocks += 2 * g * np1_p * h_p * out_itemsize         # output tile
    temps = gn * (kf_p * 2                               # xb (bf16)
                  + d_p * (2 + 4)                        # one-hot bf16 + iota i32
                  + h_p * 4)                             # f32 accumulator
    return blocks + temps


def _pick_graphs_per_tile(b, n, kf, d, h, out_itemsize, budget):
    resident = _resident_vmem_bytes(kf, d, h)
    # v7x megacore: keep >= 2 grid steps so both TensorCores get work.
    g = max(1, (b + 1) // 2)
    while g > 1 and resident + _tile_vmem_bytes(g, n, kf, d, h,
                                                out_itemsize) > budget:
        g = max(1, g // 2)
    return g


# ----------------------------------------------------------------------------
# Wrapper
# ----------------------------------------------------------------------------
def graph_node_feature(x, in_degree, w_linear, b_linear, in_deg_table,
                       graph_token, *, graphs_per_tile=None,
                       out_dtype=jnp.float32,
                       vmem_budget_bytes=40 * 1024 * 1024):
    """Pallas implementation of GraphNodeFeature.forward (graph_type='undirected').

    x:             (B, N, K, F) float32
    in_degree:     (B, N)       int32
    w_linear:      (H, F)       Linear weight (PyTorch convention)
    b_linear:      (H,)         Linear bias
    in_deg_table:  (num_in_degree, H) embedding table (row 0 = padding_idx)
    graph_token:   (1, H)       graph token embedding
    returns:       (B, N + 1, H) out_dtype
    """
    B, N, K, F = x.shape
    H = w_linear.shape[0]
    D = in_deg_table.shape[0]
    KF = K * F

    # No dtype cast of x here (would be an extra HBM pass); reshape of the two
    # minor contiguous dims is free.
    x3 = x.reshape(B, N, KF)
    idx3 = in_degree.astype(jnp.int32).reshape(B, N, 1)

    # Resident MXU operands in bf16 (native MXU rate on v5e/v6e/v7x).
    w_kt = jnp.tile(jnp.transpose(w_linear), (K, 1)).astype(jnp.bfloat16)  # (KF, H)
    tbl = in_deg_table.astype(jnp.bfloat16)                                # (D, H)
    bias = (jnp.float32(K) * b_linear.astype(jnp.float32)).reshape(1, H)
    tok = graph_token.astype(jnp.float32).reshape(1, H)

    # Keep H lane-dense (unmasked stores). Only costs anything if H % 128 != 0.
    Hp = _round_up(H, 128)
    if Hp != H:
        padc = ((0, 0), (0, Hp - H))
        w_kt = jnp.pad(w_kt, padc)
        tbl = jnp.pad(tbl, padc)
        bias = jnp.pad(bias, padc)
        tok = jnp.pad(tok, padc)

    out_itemsize = jnp.dtype(out_dtype).itemsize
    if graphs_per_tile is None:
        g = _pick_graphs_per_tile(B, N, KF, D, Hp, out_itemsize,
                                  vmem_budget_bytes)
    else:
        g = max(1, min(graphs_per_tile, B))

    need = (_resident_vmem_bytes(KF, D, Hp)
            + _tile_vmem_bytes(g, N, KF, D, Hp, out_itemsize))
    vmem_limit = int(min(max(32 * 1024 * 1024, need + (8 << 20)),
                         128 * 1024 * 1024))

    grid = (pl.cdiv(B, g),)
    out = pl.pallas_call(
        _graph_node_feature_kernel,
        out_shape=jax.ShapeDtypeStruct((B, N + 1, Hp), out_dtype),
        grid_spec=pltpu.PrefetchScalarGridSpec(
            num_scalar_prefetch=0,
            grid=grid,
            in_specs=[
                pl.BlockSpec((g, N, KF), lambda t: (t, 0, 0)),   # x tile
                pl.BlockSpec((g, N, 1), lambda t: (t, 0, 0)),    # in-degree tile
                pl.BlockSpec((KF, Hp), lambda t: (0, 0)),        # weight (resident)
                pl.BlockSpec((D, Hp), lambda t: (0, 0)),         # table (resident)
                pl.BlockSpec((1, Hp), lambda t: (0, 0)),         # K*bias (resident)
                pl.BlockSpec((1, Hp), lambda t: (0, 0)),         # graph token (resident)
            ],
            out_specs=pl.BlockSpec((g, N + 1, Hp), lambda t: (t, 0, 0)),
        ),
        compiler_params=pltpu.CompilerParams(
            dimension_semantics=("parallel",),
            vmem_limit_bytes=vmem_limit),
    )(x3, idx3, w_kt, tbl, bias, tok)

    if Hp != H:
        out = out[..., :H]
    return out


# ----------------------------------------------------------------------------
# Reference / demo
# ----------------------------------------------------------------------------
def _reference(x, in_degree, w_linear, b_linear, in_deg_table, graph_token):
    """Pure-JAX f32 reference matching the PyTorch forward."""
    nf = jnp.einsum('bnkf,hf->bnkh', x, w_linear) + b_linear   # Linear per atom
    nf = nf.sum(axis=2) + jnp.take(in_deg_table, in_degree, axis=0)
    B = x.shape[0]
    H = w_linear.shape[0]
    gt = jnp.broadcast_to(graph_token.reshape(1, 1, H), (B, 1, H))
    return jnp.concatenate([gt, nf], axis=1)


def _init_params(key, *, feat_dim, hidden_dim, num_in_degree, n_layers):
    k_w, k_emb, k_tok = jax.random.split(key, 3)
    lin_std = 0.02 / math.sqrt(n_layers)
    w_linear = lin_std * jax.random.normal(k_w, (hidden_dim, feat_dim),
                                           dtype=jnp.float32)
    b_linear = jnp.zeros((hidden_dim,), dtype=jnp.float32)
    in_deg_table = 0.02 * jax.random.normal(k_emb, (num_in_degree, hidden_dim),
                                            dtype=jnp.float32)
    in_deg_table = in_deg_table.at[0].set(0.0)   # padding_idx=0 -> zero row
    graph_token = 0.02 * jax.random.normal(k_tok, (1, hidden_dim),
                                           dtype=jnp.float32)
    return w_linear, b_linear, in_deg_table, graph_token


if __name__ == "__main__":
    key = jax.random.PRNGKey(0)
    k_params, k_x, k_deg = jax.random.split(key, 3)

    # Small forward-consistent shapes; H multiple of 128 (lane-dense stores),
    # N multiple of 8 (free leading-dim reshapes in-kernel).
    B, N, K, F = 2, 8, 3, 16          # x.dim() == 4: (n_graph, n_node, atoms, feat)
    H = 128                           # hidden_dim
    NUM_IN_DEGREE = 64
    N_LAYERS = 4

    w_linear, b_linear, in_deg_table, graph_token = _init_params(
        k_params, feat_dim=F, hidden_dim=H,
        num_in_degree=NUM_IN_DEGREE, n_layers=N_LAYERS)

    x = jax.random.normal(k_x, (B, N, K, F), dtype=jnp.float32)
    in_degree = jax.random.randint(k_deg, (B, N), 0, NUM_IN_DEGREE,
                                   dtype=jnp.int32)

    out = graph_node_feature(x, in_degree, w_linear, b_linear,
                             in_deg_table, graph_token)
    out = jax.block_until_ready(out)
    assert out.shape == (B, N + 1, H), out.shape

    ref = _reference(x, in_degree, w_linear, b_linear, in_deg_table, graph_token)
    # bf16 matmul operands (x, W, table) -> loose tolerance; accumulation,
    # bias and token path are f32.
    assert jnp.allclose(out, ref, atol=2e-2, rtol=2e-2), \
        float(jnp.max(jnp.abs(out - ref)))

    print("KERNEL_OK")
</pallas_src>

<mosaic_0001>
module attributes {stable_mosaic.version = 11 : i64} {
  func.func @_graph_node_feature_kernel(%arg0: i32, %arg1: memref<1x8x48xf32, #tpu.memory_space<vmem>>, %arg2: memref<1x8x1xi32, #tpu.memory_space<vmem>>, %arg3: memref<48x128xbf16, #tpu.memory_space<vmem>>, %arg4: memref<64x128xbf16, #tpu.memory_space<vmem>>, %arg5: memref<1x128xf32, #tpu.memory_space<vmem>>, %arg6: memref<1x128xf32, #tpu.memory_space<vmem>>, %arg7: memref<1x9x128xf32, #tpu.memory_space<vmem>>) attributes {dimension_semantics = [#tpu.dimension_semantics<parallel>], iteration_bounds = array<i64: 2>, scalar_prefetch = 0 : i64, scratch_operands = 0 : i64, tpu.core_type = #tpu.core_type<tc>, window_params = [{transform_indices = @transform_0, window_bounds = array<i64: 1, 8, 48>}, {transform_indices = @transform_1, window_bounds = array<i64: 1, 8, 1>}, {pipeline_mode = #tpu.pipeline_mode<synchronous>, transform_indices = @transform_2, window_bounds = array<i64: 48, 128>}, {pipeline_mode = #tpu.pipeline_mode<synchronous>, transform_indices = @transform_3, window_bounds = array<i64: 64, 128>}, {pipeline_mode = #tpu.pipeline_mode<synchronous>, transform_indices = @transform_4, window_bounds = array<i64: 1, 128>}, {pipeline_mode = #tpu.pipeline_mode<synchronous>, transform_indices = @transform_5, window_bounds = array<i64: 1, 128>}, {transform_indices = @transform_6, window_bounds = array<i64: 1, 9, 128>}]} {
    %c0 = arith.constant 0 : index
    %c0_0 = arith.constant 0 : index
    %c0_1 = arith.constant 0 : index
    %0 = vector.load %arg1[%c0, %c0_0, %c0_1] : memref<1x8x48xf32, #tpu.memory_space<vmem>>, vector<1x8x48xf32>
    %1 = arith.truncf %0 : vector<1x8x48xf32> to vector<1x8x48xbf16>
    %2 = vector.shape_cast %1 : vector<1x8x48xbf16> to vector<8x48xbf16>
    %c0_2 = arith.constant 0 : index
    %c0_3 = arith.constant 0 : index
    %3 = vector.load %arg3[%c0_2, %c0_3] : memref<48x128xbf16, #tpu.memory_space<vmem>>, vector<48x128xbf16>
    %cst = arith.constant dense<0.000000e+00> : vector<8x128xf32>
    %4 = tpu.matmul %2, %3, %cst {dimension_numbers = #tpu.dot_dimension_numbers<[1], [0], [0], [1], [0, 0, 1, 1], [], []>} : vector<8x48xbf16>, vector<48x128xbf16>, vector<8x128xf32> -> vector<8x128xf32>
    %c0_4 = arith.constant 0 : index
    %c0_5 = arith.constant 0 : index
    %c0_6 = arith.constant 0 : index
    %5 = vector.load %arg2[%c0_4, %c0_5, %c0_6] : memref<1x8x1xi32, #tpu.memory_space<vmem>>, vector<1x8x1xi32>
    %6 = vector.shape_cast %5 : vector<1x8x1xi32> to vector<8x1xi32>
    %7 = tpu.iota {dimensions = array<i32: 1>} : vector<8x64xi32>
    %8 = vector.broadcast %6 : vector<8x1xi32> to vector<8x64xi32>
    %9 = arith.cmpi eq, %7, %8 : vector<8x64xi32>
    %10 = arith.extui %9 : vector<8x64xi1> to vector<8x64xi32>
    %11 = arith.sitofp %10 : vector<8x64xi32> to vector<8x64xf32>
    %12 = arith.truncf %11 : vector<8x64xf32> to vector<8x64xbf16>
    %c0_7 = arith.constant 0 : index
    %c0_8 = arith.constant 0 : index
    %13 = vector.load %arg4[%c0_7, %c0_8] : memref<64x128xbf16, #tpu.memory_space<vmem>>, vector<64x128xbf16>
    %cst_9 = arith.constant dense<0.000000e+00> : vector<8x128xf32>
    %14 = tpu.matmul %12, %13, %cst_9 {dimension_numbers = #tpu.dot_dimension_numbers<[1], [0], [0], [1], [0, 0, 1, 1], [], []>} : vector<8x64xbf16>, vector<64x128xbf16>, vector<8x128xf32> -> vector<8x128xf32>
    %15 = arith.addf %4, %14 : vector<8x128xf32>
    %c0_10 = arith.constant 0 : index
    %c0_11 = arith.constant 0 : index
    %16 = vector.load %arg5[%c0_10, %c0_11] : memref<1x128xf32, #tpu.memory_space<vmem>>, vector<1x128xf32>
    %17 = vector.broadcast %16 : vector<1x128xf32> to vector<8x128xf32>
    %18 = arith.addf %15, %17 : vector<8x128xf32>
    %19 = vector.shape_cast %18 : vector<8x128xf32> to vector<1x8x128xf32>
    %c0_12 = arith.constant 0 : index
    %c1 = arith.constant 1 : index
    %c0_13 = arith.constant 0 : index
    %20 = vector.load %arg7[%c0_12, %c1, %c0_13] : memref<1x9x128xf32, #tpu.memory_space<vmem>>, vector<1x8x128xf32>
    tpu.vector_store %arg7[%c0_12, %c1, %c0_13], %19 {strides = array<i32>} : memref<1x9x128xf32, #tpu.memory_space<vmem>>, vector<1x8x128xf32>,
    %c0_14 = arith.constant 0 : index
    %c0_15 = arith.constant 0 : index
    %21 = vector.load %arg6[%c0_14, %c0_15] : memref<1x128xf32, #tpu.memory_space<vmem>>, vector<1x128xf32>
    %22 = vector.shape_cast %21 : vector<1x128xf32> to vector<1x1x128xf32>
    %c0_16 = arith.constant 0 : index
    %c0_17 = arith.constant 0 : index
    %c0_18 = arith.constant 0 : index
    %23 = vector.load %arg7[%c0_16, %c0_17, %c0_18] : memref<1x9x128xf32, #tpu.memory_space<vmem>>, vector<1x1x128xf32>
    tpu.vector_store %arg7[%c0_16, %c0_17, %c0_18], %22 {strides = array<i32>} : memref<1x9x128xf32, #tpu.memory_space<vmem>>, vector<1x1x128xf32>,
    return
  }
  func.func @transform_0(%arg0: i32) -> (i32, i32, i32) {
    %c0_i32 = arith.constant 0 : i32
    %c0_i32_0 = arith.constant 0 : i32
    %c0_i32_1 = arith.constant 0 : i32
    return %arg0, %c0_i32, %c0_i32_0 : i32, i32, i32
  }
  func.func @transform_1(%arg0: i32) -> (i32, i32, i32) {
    %c0_i32 = arith.constant 0 : i32
    %c0_i32_0 = arith.constant 0 : i32
    %c0_i32_1 = arith.constant 0 : i32
    return %arg0, %c0_i32, %c0_i32_0 : i32, i32, i32
  }
  func.func @transform_2(%arg0: i32) -> (i32, i32) {
    %c0_i32 = arith.constant 0 : i32
    %c0_i32_0 = arith.constant 0 : i32
    %c0_i32_1 = arith.constant 0 : i32
    return %c0_i32, %c0_i32_0 : i32, i32
  }
  func.func @transform_3(%arg0: i32) -> (i32, i32) {
    %c0_i32 = arith.constant 0 : i32
    %c0_i32_0 = arith.constant 0 : i32
    %c0_i32_1 = arith.constant 0 : i32
    return %c0_i32, %c0_i32_0 : i32, i32
  }
  func.func @transform_4(%arg0: i32) -> (i32, i32) {
    %c0_i32 = arith.constant 0 : i32
    %c0_i32_0 = arith.constant 0 : i32
    %c0_i32_1 = arith.constant 0 : i32
    return %c0_i32, %c0_i32_0 : i32, i32
  }
  func.func @transform_5(%arg0: i32) -> (i32, i32) {
    %c0_i32 = arith.constant 0 : i32
    %c0_i32_0 = arith.constant 0 : i32
    %c0_i32_1 = arith.constant 0 : i32
    return %c0_i32, %c0_i32_0 : i32, i32
  }
  func.func @transform_6(%arg0: i32) -> (i32, i32, i32) {
    %c0_i32 = arith.constant 0 : i32
    %c0_i32_0 = arith.constant 0 : i32
    %c0_i32_1 = arith.constant 0 : i32
    return %arg0, %c0_i32, %c0_i32_0 : i32, i32, i32
  }
}

</mosaic_0001>

<llo_original>
// kernel: tpu_custom_call.1
$region0: #{tpu_custom_call.1}
  #allocation0 [shape = 'u32[]', space=smem, size = 0x4, offset = 0x4, fixed_abs, tag = 'smem constant byte address 0x4 - core index']
  #allocation1 [shape = 'u32[144,128]{1,0:T(1,128)}', space=vmem, size = 0x12000, scoped, tag = 'internal scratch']
  %s0 = inlined_call_operand.hbm [shape: f32[2,8,48], index: 0, kind: input, shape index: {}]
  %s1 = inlined_call_operand.vmem [shape: s32[2,8,1], index: 1, kind: input, shape index: {}]
  %s2 = inlined_call_operand.vmem [shape: bf16[48,128], index: 2, kind: input, shape index: {}]
  %s3 = inlined_call_operand.hbm [shape: bf16[64,128], index: 3, kind: input, shape index: {}]
  %s4 = inlined_call_operand.vmem [shape: f32[1,128], index: 4, kind: input, shape index: {}]
  %s5 = inlined_call_operand.vmem [shape: f32[1,128], index: 5, kind: input, shape index: {}]
  %s6 = inlined_call_operand.vmem [shape: f32[2,9,128], index: 6, kind: output, shape index: {}]
  %s7 = sld [smem:[#allocation0]]
  $region65: #{tpu_custom_call.1} parent=0
    _
  %s9 = ssub.s32 1, %s7
  %s10 = scalar_select 0, %s9, %s7
  $region1: #{tpu_custom_call.1} parent=0
    #allocation2 [shape = 'u8[8192]{0}', space=vmem, size = 0x2000, scoped, tag = 'input window, operand 0']
    #allocation3 [shape = 's32[2]{0}', space=sflag, size = 0x8, scoped, tag = 'scoped memory for tpu_custom_call.1']
    #allocation4 [shape = 'u8[16384]{0}', space=vmem, size = 0x4000, scoped, tag = 'input window, operand 3, single buffered']
    #allocation5 [shape = 's32[1]{0}', space=sflag, size = 0x4, scoped, tag = 'scoped memory for tpu_custom_call.1']
    %11 = vsyncpa [#allocation3], 0
    %s12 = scalar_lea.sflag [#allocation3], 1
    %13 = vsyncpa %s12, 0
    %14 = vsyncpa [#allocation5], 0
    loop: start=0, step=1, limit=4
    $region2: #{tpu_custom_call.1} parent=1 // loop_pre_header
      _
    $region3: #{tpu_custom_call.1} parent=1 // loop_header
      %s16 = sphi 0, %s20
      %p17 = scmp.ge.s32.totalorder %s16, 4
      %s26 = sphi 0, %s28
      %s29 = sphi 0, %s26
      %s30 = sphi 0, %s29
      %s46 = sphi 0, %s30
      %s52 = sphi 0, %s54
      %s55 = sphi 0, %s52
      %s56 = sphi 0, %s55
      %s72 = sphi 0, %s56
      %s76 = sphi 0, %s76
      %s78 = sphi 0, %s76
      %s79 = sphi 0, %s78
      %s93 = sphi 0, %s79
      %s97 = sphi 0, %s97
      %s99 = sphi 0, %s97
      %s100 = sphi 0, %s99
      %s114 = sphi 0, %s100
      %s118 = sphi 0, %s118
      %s120 = sphi 0, %s118
      %s121 = sphi 0, %s120
      %s135 = sphi 0, %s121
      %s139 = sphi 0, %s139
      %s141 = sphi 0, %s139
      %s142 = sphi 0, %s141
      %s156 = sphi 0, %s142
      %s162 = sphi 0, %s164
      %s165 = sphi 0, %s162
      %s166 = sphi 0, %s165
      %s182 = sphi 0, %s166
    $region4: #{tpu_custom_call.1} parent=1 // loop_header_branch
      %19 = sbr.rel (%p17) target = $region8
    $region5: #{tpu_custom_call.1} parent=1 // loop_body
      %s21 = ssub.s32 %s16, 1
      %s22 = ssub.s32 %s16, 2
      %s23 = sadd.s32 %s16, 1
      %s24 = ssub.s32 %s16, %s23
      %p25 = scmp.eq.s32.totalorder %s24, 0
      %s27 = sadd.s32 %s26, 1
      %s28 = scalar_select %p25, %s26, %s27
      %p31 = pneg %p25
      %p32 = scmp.eq.s32.totalorder %s16, 1
      %p33 = por %p31, %p32
      %p34 = scmp.ne.s32.totalorder %s26, %s29
      %p35 = scmp.eq.s32.totalorder %s16, 0
      %p36 = por %p34, %p35
      %p37 = scmp.ne.s32.totalorder %s26, %s29
      %p38 = scmp.eq.s32.totalorder %s21, 1
      %p39 = por %p37, %p38
      %p40 = scmp.ne.s32.totalorder %s29, %s30
      %p41 = scmp.eq.s32.totalorder %s21, 0
      %p42 = por %p40, %p41
      %p43 = scmp.ne.s32.totalorder %s29, %s30
      %p44 = scmp.eq.s32.totalorder %s22, 1
      %p45 = por %p43, %p44
      %p47 = scmp.ne.s32.totalorder %s30, %s46
      %p48 = scmp.eq.s32.totalorder %s22, 0
      %p49 = por %p47, %p48
      %s50 = ssub.s32 %s16, %s23
      %p51 = scmp.eq.s32.totalorder %s50, 0
      %s53 = sadd.s32 %s52, 1
      %s54 = scalar_select %p51, %s52, %s53
      %p57 = pneg %p51
      %p58 = scmp.eq.s32.totalorder %s16, 1
      %p59 = por %p57, %p58
      %p60 = scmp.ne.s32.totalorder %s52, %s55
      %p61 = scmp.eq.s32.totalorder %s16, 0
      %p62 = por %p60, %p61
      %p63 = scmp.ne.s32.totalorder %s52, %s55
      %p64 = scmp.eq.s32.totalorder %s21, 1
      %p65 = por %p63, %p64
      %p66 = scmp.ne.s32.totalorder %s55, %s56
      %p67 = scmp.eq.s32.totalorder %s21, 0
      %p68 = por %p66, %p67
      %p69 = scmp.ne.s32.totalorder %s55, %s56
      %p70 = scmp.eq.s32.totalorder %s22, 1
      %p71 = por %p69, %p70
      %p73 = scmp.ne.s32.totalorder %s56, %s72
      %p74 = scmp.eq.s32.totalorder %s22, 0
      %p75 = por %p73, %p74
      %s77 = sadd.s32 %s76, 1
      %p80 = scmp.eq.s32.totalorder %s16, 1
      %p81 = scmp.ne.s32.totalorder %s76, %s78
      %p82 = scmp.eq.s32.totalorder %s16, 0
      %p83 = por %p81, %p82
      %p84 = scmp.ne.s32.totalorder %s76, %s78
      %p85 = scmp.eq.s32.totalorder %s21, 1
      %p86 = por %p84, %p85
      %p87 = scmp.ne.s32.totalorder %s78, %s79
      %p88 = scmp.eq.s32.totalorder %s21, 0
      %p89 = por %p87, %p88
      %p90 = scmp.ne.s32.totalorder %s78, %s79
      %p91 = scmp.eq.s32.totalorder %s22, 1
      %p92 = por %p90, %p91
      %p94 = scmp.ne.s32.totalorder %s79, %s93
      %p95 = scmp.eq.s32.totalorder %s22, 0
      %p96 = por %p94, %p95
      %s98 = sadd.s32 %s97, 1
      %p101 = scmp.eq.s32.totalorder %s16, 1
      %p102 = scmp.ne.s32.totalorder %s97, %s99
      %p103 = scmp.eq.s32.totalorder %s16, 0
      %p104 = por %p102, %p103
      %p105 = scmp.ne.s32.totalorder %s97, %s99
      %p106 = scmp.eq.s32.totalorder %s21, 1
      %p107 = por %p105, %p106
      %p108 = scmp.ne.s32.totalorder %s99, %s100
      %p109 = scmp.eq.s32.totalorder %s21, 0
      %p110 = por %p108, %p109
      %p111 = scmp.ne.s32.totalorder %s99, %s100
      %p112 = scmp.eq.s32.totalorder %s22, 1
      %p113 = por %p111, %p112
      %p115 = scmp.ne.s32.totalorder %s100, %s114
      %p116 = scmp.eq.s32.totalorder %s22, 0
      %p117 = por %p115, %p116
      %s119 = sadd.s32 %s118, 1
      %p122 = scmp.eq.s32.totalorder %s16, 1
      %p123 = scmp.ne.s32.totalorder %s118, %s120
      %p124 = scmp.eq.s32.totalorder %s16, 0
      %p125 = por %p123, %p124
      %p126 = scmp.ne.s32.totalorder %s118, %s120
      %p127 = scmp.eq.s32.totalorder %s21, 1
      %p128 = por %p126, %p127
      %p129 = scmp.ne.s32.totalorder %s120, %s121
      %p130 = scmp.eq.s32.totalorder %s21, 0
      %p131 = por %p129, %p130
      %p132 = scmp.ne.s32.totalorder %s120, %s121
      %p133 = scmp.eq.s32.totalorder %s22, 1
      %p134 = por %p132, %p133
      %p136 = scmp.ne.s32.totalorder %s121, %s135
      %p137 = scmp.eq.s32.totalorder %s22, 0
      %p138 = por %p136, %p137
      %s140 = sadd.s32 %s139, 1
      %p143 = scmp.eq.s32.totalorder %s16, 1
      %p144 = scmp.ne.s32.totalorder %s139, %s141
      %p145 = scmp.eq.s32.totalorder %s16, 0
      %p146 = por %p144, %p145
      %p147 = scmp.ne.s32.totalorder %s139, %s141
      %p148 = scmp.eq.s32.totalorder %s21, 1
      %p149 = por %p147, %p148
      %p150 = scmp.ne.s32.totalorder %s141, %s142
      %p151 = scmp.eq.s32.totalorder %s21, 0
      %p152 = por %p150, %p151
      %p153 = scmp.ne.s32.totalorder %s141, %s142
      %p154 = scmp.eq.s32.totalorder %s22, 1
      %p155 = por %p153, %p154
      %p157 = scmp.ne.s32.totalorder %s142, %s156
      %p158 = scmp.eq.s32.totalorder %s22, 0
      %p159 = por %p157, %p158
      %s160 = ssub.s32 %s16, %s23
      %p161 = scmp.eq.s32.totalorder %s160, 0
      %s163 = sadd.s32 %s162, 1
      %s164 = scalar_select %p161, %s162, %s163
      %p167 = pneg %p161
      %p168 = scmp.eq.s32.totalorder %s16, 1
      %p169 = por %p167, %p168
      %p170 = scmp.ne.s32.totalorder %s162, %s165
      %p171 = scmp.eq.s32.totalorder %s16, 0
      %p172 = por %p170, %p171
      %p173 = scmp.ne.s32.totalorder %s162, %s165
      %p174 = scmp.eq.s32.totalorder %s21, 1
      %p175 = por %p173, %p174
      %p176 = scmp.ne.s32.totalorder %s165, %s166
      %p177 = scmp.eq.s32.totalorder %s21, 0
      %p178 = por %p176, %p177
      %p179 = scmp.ne.s32.totalorder %s165, %s166
      %p180 = scmp.eq.s32.totalorder %s22, 1
      %p181 = por %p179, %p180
      %p183 = scmp.ne.s32.totalorder %s166, %s182
      %p184 = scmp.eq.s32.totalorder %s22, 0
      %p185 = por %p183, %p184
      %p186 = scmp.le.s32.totalorder 1, %s16
      %p187 = scmp.lt.s32.totalorder %s16, 3
      %p188 = pnand %p186, %p187
      %p189 = pneg %p188
      // Predicated region
      $region9: #{tpu_custom_call.1} parent=5 // pred_check
        _
      $region10: #{tpu_custom_call.1} parent=5 // pred_check_branch
        %191 = sbr.rel (%p188) target = $region12
      $region11: #{tpu_custom_call.1} parent=5 // pred_region
        %s192 = ssub.s32 %s16, 1
        // Predicated region
        $region13: #{tpu_custom_call.1} parent=11 // pred_check
          %p193 = pneg %p89
        $region14: #{tpu_custom_call.1} parent=11 // pred_check_branch
          %195 = sbr.rel (%p193) target = $region16
        $region15: #{tpu_custom_call.1} parent=11 // pred_region
          _
        $region16: #{tpu_custom_call.1} parent=11 // pred_fallthru
          _
        // Predicated region
        $region17: #{tpu_custom_call.1} parent=11 // pred_check
          %p196 = pneg %p110
        $region18: #{tpu_custom_call.1} parent=11 // pred_check_branch
          %198 = sbr.rel (%p196) target = $region20
        $region19: #{tpu_custom_call.1} parent=11 // pred_region
          %s200 = ssub.s32 512, 512
          %201 = vsyncadd [#allocation5], %s200
          %s202 = sshll.u32 [#allocation4], 4
          %s203 = int_to_ptr.vmem [resolvable:$true] %s202
          %208 = dma.hbm_to_vmem [thread:$0]  %s3, 512, %s203, [#allocation5], 64, 64, 4
        $region20: #{tpu_custom_call.1} parent=11 // pred_fallthru
          _
        // Predicated region
        $region21: #{tpu_custom_call.1} parent=11 // pred_check
          %p209 = pneg %p131
        $region22: #{tpu_custom_call.1} parent=11 // pred_check_branch
          %211 = sbr.rel (%p209) target = $region24
        $region23: #{tpu_custom_call.1} parent=11 // pred_region
          _
        $region24: #{tpu_custom_call.1} parent=11 // pred_fallthru
          _
        // Predicated region
        $region25: #{tpu_custom_call.1} parent=11 // pred_check
          %p212 = pneg %p152
        $region26: #{tpu_custom_call.1} parent=11 // pred_check_branch
          %214 = sbr.rel (%p212) target = $region28
        $region27: #{tpu_custom_call.1} parent=11 // pred_region
          _
        $region28: #{tpu_custom_call.1} parent=11 // pred_fallthru
          _
      $region12: #{tpu_custom_call.1} parent=5 // pred_fallthru
        _
      %p215 = scmp.lt.s32.totalorder %s16, 2
      // Predicated region
      $region29: #{tpu_custom_call.1} parent=5 // pred_check
        %p216 = pneg %p215
      $region30: #{tpu_custom_call.1} parent=5 // pred_check_branch
        %218 = sbr.rel (%p216) target = $region32
      $region31: #{tpu_custom_call.1} parent=5 // pred_region
        // Predicated region
        $region33: #{tpu_custom_call.1} parent=31 // pred_check
          %p219 = pneg %p36
        $region34: #{tpu_custom_call.1} parent=31 // pred_check_branch
          %221 = sbr.rel (%p219) target = $region36
        $region35: #{tpu_custom_call.1} parent=31 // pred_region
          %s222 = sand.u32 %s26, 1
          %s223 = scalar_lea.sflag [#allocation3], %s222
          %s224 = sand.u32 %s26, 1
          %s225 = smul.addr %s224, 8
          %s226 = scalar_lea.vmem [#allocation2], %s225
          %s228 = ssub.s32 128, 128
          %229 = vsyncadd %s223, %s228
          %s230 = smul.addr %s16, 128
          %s231 = scalar_lea.hbm %s0, %s230
          %s233 = sshll.u32 %s226, 4
          %s234 = int_to_ptr.vmem [resolvable:$true] %s233
          %236 = dma.hbm_to_vmem [thread:$0]  %s231, 128, %s234, %s223
        $region36: #{tpu_custom_call.1} parent=31 // pred_fallthru
          _
        // Predicated region
        $region37: #{tpu_custom_call.1} parent=31 // pred_check
          %p237 = pneg %p62
        $region38: #{tpu_custom_call.1} parent=31 // pred_check_branch
          %239 = sbr.rel (%p237) target = $region40
        $region39: #{tpu_custom_call.1} parent=31 // pred_region
          %p240 = scmp.lt.s32.totalorder %s16, 1
          %s241 = scalar_select %p240, %s16, 1
          %s242 = smul.addr %s241, 8
          %s243 = scalar_lea.vmem %s1, %s242
        $region40: #{tpu_custom_call.1} parent=31 // pred_fallthru
          _
      $region32: #{tpu_custom_call.1} parent=5 // pred_fallthru
        _
      %p244 = scmp.le.s32.totalorder 1, %s16
      %p245 = scmp.lt.s32.totalorder %s16, 3
      %p246 = pnand %p244, %p245
      %p247 = pneg %p246
      // Predicated region
      $region41: #{tpu_custom_call.1} parent=5 // pred_check
        _
      $region42: #{tpu_custom_call.1} parent=5 // pred_check_branch
        %249 = sbr.rel (%p246) target = $region44
      $region43: #{tpu_custom_call.1} parent=5 // pred_region
        %s250 = ssub.s32 %s16, 1
        %s251 = sand.u32 %s29, 1
        %s252 = scalar_lea.sflag [#allocation3], %s251
        %s253 = sand.u32 %s29, 1
        %s254 = smul.addr %s253, 8
        %s255 = scalar_lea.vmem [#allocation2], %s254
        // Predicated region
        $region45: #{tpu_custom_call.1} parent=43 // pred_check
          %p256 = pneg %p42
        $region46: #{tpu_custom_call.1} parent=43 // pred_check_branch
          %258 = sbr.rel (%p256) target = $region48
        $region47: #{tpu_custom_call.1} parent=43 // pred_region
          %259 = dma.done %s252, 128
        $region48: #{tpu_custom_call.1} parent=43 // pred_fallthru
          _
        // Predicated region
        $region49: #{tpu_custom_call.1} parent=43 // pred_check
          %p260 = pneg %p110
        $region50: #{tpu_custom_call.1} parent=43 // pred_check_branch
          %262 = sbr.rel (%p260) target = $region52
        $region51: #{tpu_custom_call.1} parent=43 // pred_region
          %263 = dma.done [#allocation5], 512
        $region52: #{tpu_custom_call.1} parent=43 // pred_fallthru
          _
        %s264 = sand.u32 %s29, 1
        %s265 = scalar_lea.sflag [#allocation3], %s264
        %s266 = sand.u32 %s29, 1
        %s267 = smul.addr %s266, 8
        %s268 = scalar_lea.vmem [#allocation2], %s267
        %p269 = pneg %p42
        %p270 = pneg %p39
        %p271 = scmp.lt.s32.totalorder %s21, 1
        %s272 = scalar_select %p271, %s21, 1
        %s273 = smul.addr %s272, 8
        %s274 = scalar_lea.vmem %s1, %s273
        %p275 = pneg %p68
        %p276 = pneg %p65
        %p277 = pneg %p89
        %p278 = pneg %p86
        %p279 = pneg %p110
        %p280 = pneg %p107
        %p281 = pneg %p131
        %p282 = pneg %p128
        %p283 = pneg %p152
        %p284 = pneg %p149
        %p285 = pneg %p178
        %p286 = pneg %p175
        %p287 = scmp.lt.s32.totalorder %s21, 1
        %s288 = scalar_select %p287, %s21, 1
        %s289 = smul.addr %s288, 2
        %s290 = smul.addr %s289, 8
        %s291 = scalar_lea.vmem %s6, %s290
        %p292 = scmp.lt.s32.totalorder %s21, 1
        %s293 = scalar_select %p292, %s21, 1
        %s294 = smul.addr %s293, 8
        %s295 = scalar_lea.vmem %s1, %s294
        %p296 = scmp.lt.s32.totalorder %s21, 1
        %s297 = scalar_select %p296, %s21, 1
        %s298 = smul.addr %s297, 2
        %s299 = smul.addr %s298, 8
        %s300 = scalar_lea.vmem %s6, %s299
        %v302 = vld [vmem:[%s255] sm:$0xff]
        %v303 = vpack.c.bf16 %v302, %v302
        %v304 = vld [vmem:[%s2] sm:$0xf]
        %v305 = vld [vmem:[%s2 + $0x4] sm:$0xf]
        %v306 = vld [vmem:[%s2 + $0x8] sm:$0xf]
        %v307 = vld [vmem:[%s2 + $0xc] sm:$0xf]
        %v308 = vld [vmem:[%s2 + $0x10] sm:$0xf]
        %v309 = vld [vmem:[%s2 + $0x14] sm:$0xf]
        %v310 = vld [vmem:[%s295] sm:$0xff]
        %v311 = vlaneseq
        %v312 = vand.u32 %v311, 127
        %313 = vset.pattern.permute.xlu0 0
        %314 = vperm.xlu0 %313, %v310
        %v315 = vpop.permute.xlu0 %314
        %vm316 = vcmp.eq.s32.totalorder %v312, %v315
        %v317 = vsel %vm316, 1, 0
        %v318 = vcvt.s32.f32 %v317
        %v319 = vpack.c.bf16 %v318, %v318
        %v320 = vld [vmem:[#allocation4] sm:$0xf]
        %v321 = vld [vmem:[#allocation4 + $0x4] sm:$0xf]
        %v322 = vld [vmem:[#allocation4 + $0x8] sm:$0xf]
        %v323 = vld [vmem:[#allocation4 + $0xc] sm:$0xf]
        %v324 = vld [vmem:[#allocation4 + $0x10] sm:$0xf]
        %v325 = vld [vmem:[#allocation4 + $0x14] sm:$0xf]
        %v326 = vld [vmem:[#allocation4 + $0x18] sm:$0xf]
        %v327 = vld [vmem:[#allocation4 + $0x1c] sm:$0xf]
        %v336 = vunpack.c.l.b16 %v320
        %v337 = vunpack.c.l.b16 %v321
        %v338 = vunpack.c.l.b16 %v322
        %v339 = vunpack.c.l.b16 %v323
        %v340 = vunpack.c.l.b16 %v324
        %v341 = vunpack.c.l.b16 %v325
        %v342 = vunpack.c.l.b16 %v326
        %v343 = vunpack.c.l.b16 %v327
        %v344 = vpack.c.b16 %v337, %v336
        %v345 = vpack.c.b16 %v339, %v338
        %v346 = vpack.c.b16 %v341, %v340
        %v347 = vpack.c.b16 %v343, %v342
        %vm352 = vcmask 523264
        %v354 = vsel %vm352, %v319, 0
        %356 = vmatprep.subr.bf16.mxu0 0
        %357 = vmatpush1.bf16.msra.mxu0 %v344
        %358 = vmatprep.subr.bf16.mxu0 0
        %359 = vmatpush1.bf16.msra.mxu0 %v345
        %360 = vmatprep.subr.bf16.mxu0 0
        %361 = vmatpush1.bf16.msra.mxu0 %v346
        %362 = vmatprep.subr.bf16.mxu0 0
        %363 = vmatpush1.bf16.msra.mxu0 %v347
        %364 = vmatprep.subr.bf16.mxu0 0
        %365 = vmatpush1.bf16.msra.mxu0 0
        %366 = vmatprep.subr.bf16.mxu0 0
        %367 = vmatpush1.bf16.msra.mxu0 0
        %368 = vmatprep.subr.bf16.mxu0 0
        %369 = vmatpush1.bf16.msra.mxu0 0
        %370 = vmatprep.subr.bf16.mxu0 0
        %371 = vmatpush1.bf16.msra.mxu0 0
        %372 = vmatprep.subr.bf16.mxu0 0
        %373 = vmatpush1.bf16.msra.mxu0 0
        %374 = vmatprep.subr.bf16.mxu0 0
        %375 = vmatpush1.bf16.msra.mxu0 0
        %376 = vmatprep.subr.bf16.mxu0 0
        %377 = vmatpush1.bf16.msra.mxu0 0
        %378 = vmatprep.subr.bf16.mxu0 0
        %379 = vmatpush1.bf16.msra.mxu0 0
        %380 = vmatprep.subr.bf16.mxu0 0
        %381 = vmatpush1.bf16.msra.mxu0 0
        %382 = vmatprep.subr.bf16.mxu0 0
        %383 = vmatpush1.bf16.msra.mxu0 0
        %384 = vmatprep.subr.bf16.mxu0 0
        %385 = vmatpush1.bf16.msra.mxu0 0
        %386 = vmatprep.subr.bf16.mxu0 0
        %387 = vmatpush1.bf16.msra.mxu0 0
        %388 = vmatprep.mubr.bf16.mxu0 0
        %389 = vmatmul.mubr.bf16.gmra.mrb[0].mxu0 %v354
        %v390 = vpop.f32.mrb[0].mxu0
        %v391 = vadd.f32 0.0, %v390
        %v392 = vpop.f32.mrb[0].mxu0
        %v393 = vpop.f32.mrb[0].mxu0
        %v394 = vpop.f32.mrb[0].mxu0
        %395 = vdwg.mxu0
        %v402 = vunpack.c.l.b16 %v304
        %v403 = vunpack.c.l.b16 %v305
        %v404 = vunpack.c.l.b16 %v306
        %v405 = vunpack.c.l.b16 %v307
        %v406 = vunpack.c.l.b16 %v308
        %v407 = vunpack.c.l.b16 %v309
        %v408 = vpack.c.b16 %v403, %v402
        %v409 = vpack.c.b16 %v405, %v404
        %v410 = vpack.c.b16 %v407, %v406
        %vm414 = vcmask 392192
        %v416 = vsel %vm414, %v303, 0
        %418 = vmatprep.subr.bf16.mxu0 0
        %419 = vmatpush1.bf16.msra.mxu0 %v408
        %420 = vmatprep.subr.bf16.mxu0 0
        %421 = vmatpush1.bf16.msra.mxu0 %v409
        %422 = vmatprep.subr.bf16.mxu0 0
        %423 = vmatpush1.bf16.msra.mxu0 %v410
        %424 = vmatprep.subr.bf16.mxu0 0
        %425 = vmatpush1.bf16.msra.mxu0 0
        %426 = vmatprep.subr.bf16.mxu0 0
        %427 = vmatpush1.bf16.msra.mxu0 0
        %428 = vmatprep.subr.bf16.mxu0 0
        %429 = vmatpush1.bf16.msra.mxu0 0
        %430 = vmatprep.subr.bf16.mxu0 0
        %431 = vmatpush1.bf16.msra.mxu0 0
        %432 = vmatprep.subr.bf16.mxu0 0
        %433 = vmatpush1.bf16.msra.mxu0 0
        %434 = vmatprep.subr.bf16.mxu0 0
        %435 = vmatpush1.bf16.msra.mxu0 0
        %436 = vmatprep.subr.bf16.mxu0 0
        %437 = vmatpush1.bf16.msra.mxu0 0
        %438 = vmatprep.subr.bf16.mxu0 0
        %439 = vmatpush1.bf16.msra.mxu0 0
        %440 = vmatprep.subr.bf16.mxu0 0
        %441 = vmatpush1.bf16.msra.mxu0 0
        %442 = vmatprep.subr.bf16.mxu0 0
        %443 = vmatpush1.bf16.msra.mxu0 0
        %444 = vmatprep.subr.bf16.mxu0 0
        %445 = vmatpush1.bf16.msra.mxu0 0
        %446 = vmatprep.subr.bf16.mxu0 0
        %447 = vmatpush1.bf16.msra.mxu0 0
        %448 = vmatprep.subr.bf16.mxu0 0
        %449 = vmatpush1.bf16.msra.mxu0 0
        %450 = vmatprep.mubr.bf16.mxu0 0
        %451 = vmatmul.mubr.bf16.gmra.mrb[0].mxu0 %v416
        %v452 = vpop.f32.mrb[0].mxu0
        %v453 = vadd.f32 %v391, %v452
        %v454 = vpop.f32.mrb[0].mxu0
        %v455 = vpop.f32.mrb[0].mxu0
        %v456 = vpop.f32.mrb[0].mxu0
        %457 = vdwg.mxu0
        %v458 = vld [vmem:[%s4] sm:$0x1]
        %v460 = vlaneseq
        %v461 = vshrl.u32 %v460, 7
        %v462 = vsub.s32 0, %v461
        %v463 = vrot.slane %v458, %v462
        %v465 = vadd.f32 %v453, %v463
        %466 = vst [vmem:[%s300 + $0x1] sm:$0xff] %v465
        %v467 = vld [vmem:[%s5] sm:$0x1]
        %468 = vst [vmem:[%s300] sm:$0x1] %v467
        %p469 = scmp.lt.s32.totalorder %s21, 1
        %s470 = scalar_select %p469, %s21, 1
        %s471 = smul.addr %s470, 2
        %s472 = smul.addr %s471, 8
        %s473 = scalar_lea.vmem %s6, %s472
        // Predicated region
        $region53: #{tpu_custom_call.1} parent=43 // pred_check
          %p474 = pneg %p175
        $region54: #{tpu_custom_call.1} parent=43 // pred_check_branch
          %476 = sbr.rel (%p474) target = $region56
        $region55: #{tpu_custom_call.1} parent=43 // pred_region
          _
        $region56: #{tpu_custom_call.1} parent=43 // pred_fallthru
          _
      $region44: #{tpu_custom_call.1} parent=5 // pred_fallthru
        _
      %p477 = scmp.le.s32.totalorder 2, %s16
      // Predicated region
      $region57: #{tpu_custom_call.1} parent=5 // pred_check
        %p478 = pneg %p477
      $region58: #{tpu_custom_call.1} parent=5 // pred_check_branch
        %480 = sbr.rel (%p478) target = $region60
      $region59: #{tpu_custom_call.1} parent=5 // pred_region
        %s481 = ssub.s32 %s16, 2
        // Predicated region
        $region61: #{tpu_custom_call.1} parent=59 // pred_check
          %p482 = pneg %p181
        $region62: #{tpu_custom_call.1} parent=59 // pred_check_branch
          %484 = sbr.rel (%p482) target = $region64
        $region63: #{tpu_custom_call.1} parent=59 // pred_region
          %p485 = scmp.lt.s32.totalorder %s22, 1
          %s486 = scalar_select %p485, %s22, 1
          %s487 = smul.addr %s486, 2
          %s488 = smul.addr %s487, 8
          %s489 = scalar_lea.vmem %s6, %s488
        $region64: #{tpu_custom_call.1} parent=59 // pred_fallthru
          _
      $region60: #{tpu_custom_call.1} parent=5 // pred_fallthru
        _
    $region6: #{tpu_custom_call.1} parent=1 // loop_footer
      %s20 = sadd.s32 1, %s16
    $region7: #{tpu_custom_call.1} parent=1 // loop_footer_branch
      %15 = sbr.rel target = $region3
    $region8: #{tpu_custom_call.1} parent=1 // loop_exit
      _
    %490 = vsyncpa [#allocation3], 1
    %s491 = scalar_lea.sflag [#allocation3], 1
    %492 = vsyncpa %s491, 1
    %493 = vsyncpa [#allocation5], 1

</llo_original>
